<compile_context>
chip_gen: v5e
topology: v5e:2x2
jax: 0.10.0
libtpu: 0.0.40
codegen_flags: <defaults>
</compile_context>

<pallas_src>
import math
import functools

import jax
import jax.numpy as jnp
from jax.experimental import pallas as pl
from jax.experimental.pallas import tpu as pltpu


def _round_up(x: int, m: int) -> int:
    return ((x + m - 1) // m) * m


def _cdiv(a: int, b: int) -> int:
    return (a + b - 1) // b


def _vmem_limit_bytes() -> int:
    """~75% of physical VMEM, generation-aware (v5e/v6e: 96 MiB, v7x: 48 MiB)."""
    cap = None
    try:
        cap = getattr(pltpu.get_tpu_info(), "vmem_capacity_bytes", None)
    except Exception:
        cap = None
    if not cap:
        cap = 64 * 1024 * 1024          # conservative fallback = v7x physical
    return int(min(cap * 3 // 4, 100 * 1024 * 1024))


def _batch_tiling(batch: int, tm_max: int):
    """Balanced M tiling: tm multiple of 8, batch padded to tm * n_tiles."""
    b8 = _round_up(batch, 8)
    mt = _cdiv(b8, tm_max)
    tm = _round_up(_cdiv(b8, mt), 8)
    return tm, tm * mt


def _weight_spec(block_shape, index_map, buffer_count):
    # Sweepable pipeline depth on the (dominant) weight stream. Review: try 3
    # on v5e/v6e where the kernel is weight-DMA bound.  Default 2 keeps the
    # standard double buffer.
    if buffer_count is not None and buffer_count != 2:
        return pl.BlockSpec(block_shape, index_map,
                            pipeline_mode=pl.Buffered(buffer_count))
    return pl.BlockSpec(block_shape, index_map)


# ----------------------------------------------------------------------------
# Kernel body (shared by the 2-D and fused 3-D paths; layer dim is squeezed
# out of the 3-D blocks, so both see (tm, tk) x (tk, tn) -> (tm, tn) tiles).
# f32 accumulation happens directly in the VMEM-resident output block.
# ----------------------------------------------------------------------------
def _decode_kernel(*refs, k_axis, add_bias):
    if add_bias:
        f_ref, w_ref, b_ref, o_ref = refs
    else:
        f_ref, w_ref, o_ref = refs

    k = pl.program_id(k_axis)
    acc = jnp.dot(f_ref[...], w_ref[...], preferred_element_type=jnp.float32)

    @pl.when(k == 0)
    def _first():                       # direct write: no zero-init + RMW
        o_ref[...] = acc

    @pl.when(k > 0)
    def _accumulate():
        o_ref[...] += acc

    if add_bias:
        @pl.when(k == pl.num_programs(k_axis) - 1)
        def _bias():
            o_ref[...] += b_ref[...].astype(jnp.float32)


# ----------------------------------------------------------------------------
# 2-D path:  out = f @ W_cat (+ b_cat), grid (M, N, K)
# ----------------------------------------------------------------------------
def _decode_2d(f, w_pad, bias, *, add_bias, tm_max, tk, tn, param_dtype,
               vmem_limit, w_buffer_count):
    batch, dict_size = f.shape
    d_pad, a_pad = w_pad.shape

    f = f.astype(param_dtype)                       # cast once, in the wrapper
    tm, b_rows = _batch_tiling(batch, tm_max)
    if b_rows != batch or d_pad != dict_size:       # single pad op per call
        f = jnp.pad(f, ((0, b_rows - batch), (0, d_pad - dict_size)))

    mt, nt, kt = b_rows // tm, a_pad // tn, d_pad // tk
    kernel = functools.partial(_decode_kernel, k_axis=2, add_bias=add_bias)

    in_specs = [
        pl.BlockSpec((tm, tk), lambda m, n, k: (m, k)),
        _weight_spec((tk, tn), lambda m, n, k: (k, n), w_buffer_count),
    ]
    operands = [f, w_pad]
    if add_bias:
        in_specs.append(pl.BlockSpec((1, tn), lambda m, n, k: (0, n)))
        operands.append(bias)

    fb = jnp.dtype(param_dtype).itemsize
    wb = jnp.dtype(w_pad.dtype).itemsize
    cost = pl.CostEstimate(
        flops=int(2 * b_rows * d_pad * a_pad),
        transcendentals=0,
        bytes_accessed=int(b_rows * d_pad * fb * nt      # f re-read per N tile
                           + d_pad * a_pad * wb          # weights once
                           + (a_pad * 4 if add_bias else 0)
                           + b_rows * a_pad * 4))        # output write

    out = pl.pallas_call(
        kernel,
        out_shape=jax.ShapeDtypeStruct((b_rows, a_pad), jnp.float32),
        grid_spec=pltpu.PrefetchScalarGridSpec(
            num_scalar_prefetch=0,
            grid=(mt, nt, kt),
            in_specs=in_specs,
            out_specs=pl.BlockSpec((tm, tn), lambda m, n, k: (m, n)),
        ),
        compiler_params=pltpu.CompilerParams(
            dimension_semantics=("parallel", "parallel", "arbitrary"),
            vmem_limit_bytes=vmem_limit,
        ),
        cost_estimate=cost,
    )(*operands)
    return out[:batch] if b_rows != batch else out


# ----------------------------------------------------------------------------
# Fused 3-D path:  out[l] = f[:, l, :] @ W_l (+ b_l), grid (L, M, N, K)
# ----------------------------------------------------------------------------
def _decode_3d(f, w_stk, bias_stk, *, add_bias, tm_max, tk, tn, param_dtype,
               vmem_limit, w_buffer_count):
    batch, n_layers, dict_size = f.shape
    _, d_pad, a_pad = w_stk.shape

    # Cast once, then transpose so the last two dims of every block stay
    # (8,128)-aligned: (B, L, D) -> (L, B, D).
    f = jnp.swapaxes(f.astype(param_dtype), 0, 1)
    tm, b_rows = _batch_tiling(batch, tm_max)
    if b_rows != batch or d_pad != dict_size:
        f = jnp.pad(f, ((0, 0), (0, b_rows - batch), (0, d_pad - dict_size)))

    mt, nt, kt = b_rows // tm, a_pad // tn, d_pad // tk
    kernel = functools.partial(_decode_kernel, k_axis=3, add_bias=add_bias)

    in_specs = [
        pl.BlockSpec((pl.Squeezed(), tm, tk), lambda l, m, n, k: (l, m, k)),
        _weight_spec((pl.Squeezed(), tk, tn),
                     lambda l, m, n, k: (l, k, n), w_buffer_count),
    ]
    operands = [f, w_stk]
    if add_bias:
        in_specs.append(
            pl.BlockSpec((pl.Squeezed(), 1, tn), lambda l, m, n, k: (l, 0, n)))
        operands.append(bias_stk)

    fb = jnp.dtype(param_dtype).itemsize
    wb = jnp.dtype(w_stk.dtype).itemsize
    cost = pl.CostEstimate(
        flops=int(2 * n_layers * b_rows * d_pad * a_pad),
        transcendentals=0,
        bytes_accessed=int(n_layers * b_rows * d_pad * fb * nt
                           + n_layers * d_pad * a_pad * wb
                           + (n_layers * a_pad * 4 if add_bias else 0)
                           + n_layers * b_rows * a_pad * 4))

    out = pl.pallas_call(
        kernel,
        out_shape=jax.ShapeDtypeStruct((n_layers, b_rows, a_pad), jnp.float32),
        grid_spec=pltpu.PrefetchScalarGridSpec(
            num_scalar_prefetch=0,
            grid=(n_layers, mt, nt, kt),
            in_specs=in_specs,
            out_specs=pl.BlockSpec((pl.Squeezed(), tm, tn),
                                   lambda l, m, n, k: (l, m, n)),
        ),
        compiler_params=pltpu.CompilerParams(
            dimension_semantics=("parallel", "parallel", "parallel",
                                 "arbitrary"),
            vmem_limit_bytes=vmem_limit,
        ),
        cost_estimate=cost,
    )(*operands)
    return out      # (L, b_rows, a_pad); caller slices valid rows/columns


# ----------------------------------------------------------------------------
# Module equivalent
# ----------------------------------------------------------------------------
class CrossCoderDecoderVariableDimPallas:
    """JAX/Pallas port of CrossCoderDecoderVariableDim.

    Weights W_l are stored as (dict_size, act_dim_l) in `param_dtype`
    (bfloat16 by default: the forward is weight-read bandwidth bound); the
    matmul accumulates in float32.  Biases are float32.
    Tile-size knobs (tm_max/tk_max/tn_max/w_buffer_count) are sweepable;
    on v5e/v6e with 96 MiB of scoped VMEM, tk_max up to 2048 and
    w_buffer_count=3 are worth trying.
    """

    def __init__(self, activation_dims, dict_size, key,
                 same_init_for_all_layers=False, norm_init_scale=None,
                 init_with_weight=None, param_dtype=jnp.bfloat16,
                 tm_max=256, tk_max=1024, tn_max=1024,
                 min_parallel_n_tiles=2, w_buffer_count=2):
        self.num_layers = len(activation_dims)
        self.activation_dims = list(activation_dims)
        self.dict_size = dict_size
        self.param_dtype = param_dtype
        self._tm_max = tm_max
        self._w_buffer_count = w_buffer_count
        self._vmem_limit = _vmem_limit_bytes()

        keys = jax.random.split(key, self.num_layers)
        weights_f32 = []
        for i, act_dim in enumerate(activation_dims):
            if init_with_weight is not None:
                w = jnp.asarray(init_with_weight[i], dtype=jnp.float32)
            else:
                if (same_init_for_all_layers and i > 0
                        and act_dim == activation_dims[0]):
                    w = weights_f32[0]
                else:
                    # torch init.kaiming_uniform_ defaults (a=0, fan_in=act_dim)
                    bound = math.sqrt(6.0 / act_dim)
                    w = jax.random.uniform(
                        keys[i], (dict_size, act_dim),
                        minval=-bound, maxval=bound, dtype=jnp.float32)
                if norm_init_scale is not None:
                    w = (w / jnp.linalg.norm(w, axis=1, keepdims=True)
                         * norm_init_scale)
            weights_f32.append(w)

        self.weights = [w.astype(param_dtype) for w in weights_f32]
        self.biases = [jnp.zeros((a,), jnp.float32) for a in activation_dims]

        # ---- K (reduction) tiling: balanced over dict_size ------------------
        d128 = _round_up(dict_size, 128)
        kt = _cdiv(d128, tk_max)
        self._tk = _round_up(_cdiv(d128, kt), 128)
        self._d_pad = self._tk * kt

        # ---- fused 2-D buffers: concat along the output axis ----------------
        a_cat = sum(self.activation_dims)
        a128 = _round_up(a_cat, 128)
        nt = _cdiv(a128, tn_max)
        if a128 >= 256:                       # >=2 parallel N tiles (v7x 2 TCs)
            nt = max(nt, min_parallel_n_tiles)
        self._tn_cat = _round_up(_cdiv(a128, nt), 128)
        a_cat_pad = self._tn_cat * nt
        w_cat = jnp.concatenate(self.weights, axis=1)
        self._w_cat = jnp.pad(
            w_cat, ((0, self._d_pad - dict_size), (0, a_cat_pad - a_cat)))
        b_cat = jnp.concatenate(self.biases)
        self._b_cat = jnp.pad(b_cat, (0, a_cat_pad - a_cat)).reshape(1, a_cat_pad)

        # ---- fused 3-D buffers: per-layer weights stacked, padded to max ----
        a_max = max(self.activation_dims)
        am128 = _round_up(a_max, 128)
        ntl = _cdiv(am128, tn_max)
        self._tn_stk = _round_up(_cdiv(am128, ntl), 128)
        a_stk_pad = self._tn_stk * ntl
        self._w_stk = jnp.stack([
            jnp.pad(w, ((0, self._d_pad - dict_size), (0, a_stk_pad - w.shape[1])))
            for w in self.weights])
        self._b_stk = jnp.stack([
            jnp.pad(b, (0, a_stk_pad - b.shape[0])).reshape(1, a_stk_pad)
            for b in self.biases])

    @property
    def bias(self):
        """Compatibility property (parent trainers expect a single bias)."""
        return self.biases[0]

    def __call__(self, f, select_features=None, add_bias=True):
        """
        f: (batch, dict_size) or (batch, n_layers, dict_size)
        Returns a list of (batch, act_dim_l) float32 arrays, one per layer.
        """
        f = jnp.asarray(f)
        if select_features is not None:
            # Mirrors the PyTorch module: only `f` is gathered.
            sel = jnp.asarray(select_features)
            f = f[:, sel] if f.ndim == 2 else f[:, :, sel]
        if f.shape[-1] != self.dict_size:
            raise ValueError(
                f"feature dim {f.shape[-1]} != dict_size {self.dict_size}")

        common = dict(add_bias=add_bias, tm_max=self._tm_max, tk=self._tk,
                      param_dtype=self.param_dtype, vmem_limit=self._vmem_limit,
                      w_buffer_count=self._w_buffer_count)

        if f.ndim == 2:
            out_cat = _decode_2d(f, self._w_cat,
                                 self._b_cat if add_bias else None,
                                 tn=self._tn_cat, **common)
            outputs, off = [], 0
            for a in self.activation_dims:
                outputs.append(out_cat[:, off:off + a])
                off += a
            return outputs

        # 3-D path: one fused pallas_call over a leading layer grid axis.
        out_stk = _decode_3d(f, self._w_stk,
                             self._b_stk if add_bias else None,
                             tn=self._tn_stk, **common)
        batch = f.shape[0]
        return [out_stk[i, :batch, :a]
                for i, a in enumerate(self.activation_dims)]

    # Pure-JAX reference with identical dtype handling (for testing).
    def reference(self, f, select_features=None, add_bias=True):
        f = jnp.asarray(f)
        if select_features is not None:
            sel = jnp.asarray(select_features)
            f = f[:, sel] if f.ndim == 2 else f[:, :, sel]
        outs = []
        for i, (w, b) in enumerate(zip(self.weights, self.biases)):
            f_i = f if f.ndim == 2 else f[:, i]
            x = jnp.dot(f_i.astype(w.dtype).astype(jnp.float32),
                        w.astype(jnp.float32))
            if add_bias:
                x = x + b
            outs.append(x)
        return outs


# ----------------------------------------------------------------------------
# Main
# ----------------------------------------------------------------------------
if __name__ == "__main__":
    key = jax.random.PRNGKey(0)
    k_init, k_f, k_f3 = jax.random.split(key, 3)

    batch = 8
    dict_size = 256
    activation_dims = [128, 256, 384]       # variable per-layer activation dims

    dec = CrossCoderDecoderVariableDimPallas(activation_dims, dict_size, k_init)

    ok = True

    # 2-D feature path, with bias: single fused (M, N, K)-tiled pallas_call
    f = jax.random.normal(k_f, (batch, dict_size), dtype=jnp.float32)
    outs = dec(f, add_bias=True)
    outs = [jax.block_until_ready(o) for o in outs]
    refs = dec.reference(f, add_bias=True)
    for o, r, a in zip(outs, refs, activation_dims):
        ok = ok and (o.shape == (batch, a))
        ok = ok and bool(jnp.allclose(o, r, atol=1e-3, rtol=1e-3))

    # 2-D feature path, no bias: exercises the bias-less kernel variant
    outs_nb = dec(f, add_bias=False)
    outs_nb = [jax.block_until_ready(o) for o in outs_nb]
    refs_nb = dec.reference(f, add_bias=False)
    for o, r, a in zip(outs_nb, refs_nb, activation_dims):
        ok = ok and (o.shape == (batch, a))
        ok = ok and bool(jnp.allclose(o, r, atol=1e-3, rtol=1e-3))

    # 3-D feature path, with bias: single fused (L, M, N, K)-tiled pallas_call
    f3 = jax.random.normal(k_f3, (batch, len(activation_dims), dict_size),
                           dtype=jnp.float32)
    outs3 = dec(f3, add_bias=True)
    outs3 = [jax.block_until_ready(o) for o in outs3]
    refs3 = dec.reference(f3, add_bias=True)
    for o, r, a in zip(outs3, refs3, activation_dims):
        ok = ok and (o.shape == (batch, a))
        ok = ok and bool(jnp.allclose(o, r, atol=1e-3, rtol=1e-3))

    print("KERNEL_OK" if ok else "MISMATCH")
</pallas_src>

<mosaic_0001>
module attributes {stable_mosaic.version = 11 : i64} {
  func.func @_decode_kernel(%arg0: i32, %arg1: i32, %arg2: i32, %arg3: memref<8x256xbf16, #tpu.memory_space<vmem>>, %arg4: memref<256x384xbf16, #tpu.memory_space<vmem>>, %arg5: memref<1x384xf32, #tpu.memory_space<vmem>>, %arg6: memref<8x384xf32, #tpu.memory_space<vmem>>) attributes {dimension_semantics = [#tpu.dimension_semantics<parallel>, #tpu.dimension_semantics<parallel>, #tpu.dimension_semantics<arbitrary>], iteration_bounds = array<i64: 1, 2, 1>, scalar_prefetch = 0 : i64, scratch_operands = 0 : i64, tpu.core_type = #tpu.core_type<tc>, window_params = [{transform_indices = @transform_0, window_bounds = array<i64: 8, 256>}, {transform_indices = @transform_1, window_bounds = array<i64: 256, 384>}, {transform_indices = @transform_2, window_bounds = array<i64: 1, 384>}, {transform_indices = @transform_3, window_bounds = array<i64: 8, 384>}]} {
    %c0 = arith.constant 0 : index
    %c0_0 = arith.constant 0 : index
    %0 = vector.load %arg3[%c0, %c0_0] : memref<8x256xbf16, #tpu.memory_space<vmem>>, vector<8x256xbf16>
    %c0_1 = arith.constant 0 : index
    %c0_2 = arith.constant 0 : index
    %1 = vector.load %arg4[%c0_1, %c0_2] : memref<256x384xbf16, #tpu.memory_space<vmem>>, vector<256x384xbf16>
    %cst = arith.constant dense<0.000000e+00> : vector<8x384xf32>
    %2 = tpu.matmul %0, %1, %cst {dimension_numbers = #tpu.dot_dimension_numbers<[1], [0], [0], [1], [0, 0, 1, 1], [], []>} : vector<8x256xbf16>, vector<256x384xbf16>, vector<8x384xf32> -> vector<8x384xf32>
    %c0_i32 = arith.constant 0 : i32
    %3 = arith.cmpi eq, %arg2, %c0_i32 : i32
    %4 = arith.extui %3 : i1 to i32
    %c0_i32_3 = arith.constant 0 : i32
    %5 = arith.cmpi ne, %4, %c0_i32_3 : i32
    scf.if %5 {
      %c0_8 = arith.constant 0 : index
      %c0_9 = arith.constant 0 : index
      %12 = vector.load %arg6[%c0_8, %c0_9] : memref<8x384xf32, #tpu.memory_space<vmem>>, vector<8x384xf32>
      tpu.vector_store %arg6[%c0_8, %c0_9], %2 {strides = array<i32>} : memref<8x384xf32, #tpu.memory_space<vmem>>, vector<8x384xf32>,
    } else {
    }
    %c0_i32_4 = arith.constant 0 : i32
    %6 = arith.cmpi sgt, %arg2, %c0_i32_4 : i32
    %7 = arith.extui %6 : i1 to i32
    %c0_i32_5 = arith.constant 0 : i32
    %8 = arith.cmpi ne, %7, %c0_i32_5 : i32
    scf.if %8 {
      %c0_8 = arith.constant 0 : index
      %c0_9 = arith.constant 0 : index
      %12 = vector.load %arg6[%c0_8, %c0_9] : memref<8x384xf32, #tpu.memory_space<vmem>>, vector<8x384xf32>
      %13 = arith.addf %12, %2 : vector<8x384xf32>
      %c0_10 = arith.constant 0 : index
      %c0_11 = arith.constant 0 : index
      %14 = vector.load %arg6[%c0_10, %c0_11] : memref<8x384xf32, #tpu.memory_space<vmem>>, vector<8x384xf32>
      tpu.vector_store %arg6[%c0_10, %c0_11], %13 {strides = array<i32>} : memref<8x384xf32, #tpu.memory_space<vmem>>, vector<8x384xf32>,
    } else {
    }
    %c0_i32_6 = arith.constant 0 : i32
    %9 = arith.cmpi eq, %arg2, %c0_i32_6 : i32
    %10 = arith.extui %9 : i1 to i32
    %c0_i32_7 = arith.constant 0 : i32
    %11 = arith.cmpi ne, %10, %c0_i32_7 : i32
    scf.if %11 {
      %c0_8 = arith.constant 0 : index
      %c0_9 = arith.constant 0 : index
      %12 = vector.load %arg6[%c0_8, %c0_9] : memref<8x384xf32, #tpu.memory_space<vmem>>, vector<8x384xf32>
      %c0_10 = arith.constant 0 : index
      %c0_11 = arith.constant 0 : index
      %13 = vector.load %arg5[%c0_10, %c0_11] : memref<1x384xf32, #tpu.memory_space<vmem>>, vector<1x384xf32>
      %14 = vector.broadcast %13 : vector<1x384xf32> to vector<8x384xf32>
      %15 = arith.addf %12, %14 : vector<8x384xf32>
      %c0_12 = arith.constant 0 : index
      %c0_13 = arith.constant 0 : index
      %16 = vector.load %arg6[%c0_12, %c0_13] : memref<8x384xf32, #tpu.memory_space<vmem>>, vector<8x384xf32>
      tpu.vector_store %arg6[%c0_12, %c0_13], %15 {strides = array<i32>} : memref<8x384xf32, #tpu.memory_space<vmem>>, vector<8x384xf32>,
    } else {
    }
    return
  }
  func.func @transform_0(%arg0: i32, %arg1: i32, %arg2: i32) -> (i32, i32) {
    %c0_i32 = arith.constant 0 : i32
    return %arg0, %arg2 : i32, i32
  }
  func.func @transform_1(%arg0: i32, %arg1: i32, %arg2: i32) -> (i32, i32) {
    %c0_i32 = arith.constant 0 : i32
    return %arg2, %arg1 : i32, i32
  }
  func.func @transform_2(%arg0: i32, %arg1: i32, %arg2: i32) -> (i32, i32) {
    %c0_i32 = arith.constant 0 : i32
    %c0_i32_0 = arith.constant 0 : i32
    return %c0_i32, %arg1 : i32, i32
  }
  func.func @transform_3(%arg0: i32, %arg1: i32, %arg2: i32) -> (i32, i32) {
    %c0_i32 = arith.constant 0 : i32
    return %arg0, %arg1 : i32, i32
  }
}

</mosaic_0001>

<llo_original>
// kernel: tpu_custom_call.1
$region0: #{tpu_custom_call.1}
  #allocation0 [shape = 'u32[]', space=smem, size = 0x4, offset = 0x4, fixed_abs, tag = 'smem constant byte address 0x4 - core index']
  #allocation1 [shape = 'u32[72,128]{1,0:T(1,128)}', space=vmem, size = 0x9000, scoped, tag = 'internal scratch']
  %s0 = inlined_call_operand.hbm [shape: bf16[8,256], index: 0, kind: input, shape index: {}]
  %s1 = inlined_call_operand.hbm [shape: bf16[256,768], index: 1, kind: input, shape index: {}]
  %s2 = inlined_call_operand.hbm [shape: f32[1,768], index: 2, kind: input, shape index: {}]
  %s3 = inlined_call_operand.hbm [shape: f32[8,768], index: 3, kind: output, shape index: {}]
  %s4 = sld [smem:[#allocation0]]
  $region69: #{tpu_custom_call.1} parent=0
    _
  %s6 = ssub.s32 1, %s4
  %s7 = scalar_select 0, %s6, %s4
  $region1: #{tpu_custom_call.1} parent=0
    #allocation2 [shape = 'u8[4096]{0}', space=vmem, size = 0x1000, scoped, tag = 'input window, operand 0, single buffered']
    #allocation3 [shape = 's32[2]{0}', space=sflag, size = 0x8, scoped, tag = 'scoped memory for tpu_custom_call.1']
    #allocation4 [shape = 's32[2]{0}', space=sflag, size = 0x8, scoped, tag = 'scoped memory for tpu_custom_call.1']
    #allocation5 [shape = 'u8[393216]{0}', space=vmem, size = 0x60000, scoped, tag = 'input window, operand 1']
    #allocation6 [shape = 's32[2]{0}', space=sflag, size = 0x8, scoped, tag = 'scoped memory for tpu_custom_call.1']
    #allocation7 [shape = 'u8[3072]{0}', space=vmem, size = 0xc00, scoped, tag = 'input window, operand 2']
    #allocation8 [shape = 'u8[24576]{0}', space=vmem, size = 0x6000, scoped, tag = 'output window, operand 0']
    %8 = vsyncpa [#allocation3], 0
    %9 = vsyncpa [#allocation6], 0
    %s10 = scalar_lea.sflag [#allocation6], 1
    %11 = vsyncpa %s10, 0
    %12 = vsyncpa [#allocation4], 0
    %s13 = scalar_lea.sflag [#allocation4], 1
    %14 = vsyncpa %s13, 0
    loop: start=0, step=1, limit=4
    $region2: #{tpu_custom_call.1} parent=1 // loop_pre_header
      _
    $region3: #{tpu_custom_call.1} parent=1 // loop_header
      %s16 = sphi 0, %s20
      %p17 = scmp.ge.s32.totalorder %s16, 4
      %s23 = sphi 0, %s42
      %s24 = sphi 0, %s38
      %s25 = sphi 0, %s34
      %s26 = sphi 0, %s23
      %s27 = sphi 0, %s24
      %s28 = sphi 0, %s25
      %s29 = sphi 0, %s26
      %s30 = sphi 0, %s27
      %s31 = sphi 0, %s28
      %s47 = sphi 0, %s49
      %s50 = sphi 0, %s47
      %s51 = sphi 0, %s50
      %s67 = sphi 0, %s51
      %s75 = sphi 0, %s77
      %s78 = sphi 0, %s75
      %s79 = sphi 0, %s78
      %s95 = sphi 0, %s79
      %s101 = sphi 0, %s103
      %s104 = sphi 0, %s101
      %s105 = sphi 0, %s104
      %s121 = sphi 0, %s105
      %s129 = sphi 0, %s131
      %s132 = sphi 0, %s129
      %s133 = sphi 0, %s132
      %s149 = sphi 0, %s133
    $region4: #{tpu_custom_call.1} parent=1 // loop_header_branch
      %19 = sbr.rel (%p17) target = $region8
    $region5: #{tpu_custom_call.1} parent=1 // loop_body
      %s21 = ssub.s32 %s16, 1
      %s22 = ssub.s32 %s16, 2
      %s32 = sadd.s32 1, %s25
      %p33 = scmp.ge.s32.totalorder %s32, 1
      %s34 = scalar_select %p33, 0, %s32
      %s35 = sadd.s32 1, %s24
      %s36 = scalar_select %p33, %s35, %s24
      %p37 = scmp.ge.s32.totalorder %s36, 2
      %s38 = scalar_select %p37, 0, %s36
      %s39 = sadd.s32 1, %s23
      %s40 = scalar_select %p37, %s39, %s23
      %p41 = scmp.ge.s32.totalorder %s40, 1
      %s42 = scalar_select %p41, 0, %s40
      %s43 = ssub.s32 %s23, %s42
      %s44 = ssub.s32 %s25, %s34
      %s45 = sor.u32 %s43, %s44
      %p46 = scmp.eq.s32.totalorder %s45, 0
      %s48 = sadd.s32 %s47, 1
      %s49 = scalar_select %p46, %s47, %s48
      %p52 = pneg %p46
      %p53 = scmp.eq.s32.totalorder %s16, 1
      %p54 = por %p52, %p53
      %p55 = scmp.ne.s32.totalorder %s47, %s50
      %p56 = scmp.eq.s32.totalorder %s16, 0
      %p57 = por %p55, %p56
      %p58 = scmp.ne.s32.totalorder %s47, %s50
      %p59 = scmp.eq.s32.totalorder %s21, 1
      %p60 = por %p58, %p59
      %p61 = scmp.ne.s32.totalorder %s50, %s51
      %p62 = scmp.eq.s32.totalorder %s21, 0
      %p63 = por %p61, %p62
      %p64 = scmp.ne.s32.totalorder %s50, %s51
      %p65 = scmp.eq.s32.totalorder %s22, 1
      %p66 = por %p64, %p65
      %p68 = scmp.ne.s32.totalorder %s51, %s67
      %p69 = scmp.eq.s32.totalorder %s22, 0
      %p70 = por %p68, %p69
      %s71 = ssub.s32 %s25, %s34
      %s72 = ssub.s32 %s24, %s38
      %s73 = sor.u32 %s71, %s72
      %p74 = scmp.eq.s32.totalorder %s73, 0
      %s76 = sadd.s32 %s75, 1
      %s77 = scalar_select %p74, %s75, %s76
      %p80 = pneg %p74
      %p81 = scmp.eq.s32.totalorder %s16, 1
      %p82 = por %p80, %p81
      %p83 = scmp.ne.s32.totalorder %s75, %s78
      %p84 = scmp.eq.s32.totalorder %s16, 0
      %p85 = por %p83, %p84
      %p86 = scmp.ne.s32.totalorder %s75, %s78
      %p87 = scmp.eq.s32.totalorder %s21, 1
      %p88 = por %p86, %p87
      %p89 = scmp.ne.s32.totalorder %s78, %s79
      %p90 = scmp.eq.s32.totalorder %s21, 0
      %p91 = por %p89, %p90
      %p92 = scmp.ne.s32.totalorder %s78, %s79
      %p93 = scmp.eq.s32.totalorder %s22, 1
      %p94 = por %p92, %p93
      %p96 = scmp.ne.s32.totalorder %s79, %s95
      %p97 = scmp.eq.s32.totalorder %s22, 0
      %p98 = por %p96, %p97
      %s99 = ssub.s32 %s24, %s38
      %p100 = scmp.eq.s32.totalorder %s99, 0
      %s102 = sadd.s32 %s101, 1
      %s103 = scalar_select %p100, %s101, %s102
      %p106 = pneg %p100
      %p107 = scmp.eq.s32.totalorder %s16, 1
      %p108 = por %p106, %p107
      %p109 = scmp.ne.s32.totalorder %s101, %s104
      %p110 = scmp.eq.s32.totalorder %s16, 0
      %p111 = por %p109, %p110
      %p112 = scmp.ne.s32.totalorder %s101, %s104
      %p113 = scmp.eq.s32.totalorder %s21, 1
      %p114 = por %p112, %p113
      %p115 = scmp.ne.s32.totalorder %s104, %s105
      %p116 = scmp.eq.s32.totalorder %s21, 0
      %p117 = por %p115, %p116
      %p118 = scmp.ne.s32.totalorder %s104, %s105
      %p119 = scmp.eq.s32.totalorder %s22, 1
      %p120 = por %p118, %p119
      %p122 = scmp.ne.s32.totalorder %s105, %s121
      %p123 = scmp.eq.s32.totalorder %s22, 0
      %p124 = por %p122, %p123
      %s125 = ssub.s32 %s23, %s42
      %s126 = ssub.s32 %s24, %s38
      %s127 = sor.u32 %s125, %s126
      %p128 = scmp.eq.s32.totalorder %s127, 0
      %s130 = sadd.s32 %s129, 1
      %s131 = scalar_select %p128, %s129, %s130
      %p134 = pneg %p128
      %p135 = scmp.eq.s32.totalorder %s16, 1
      %p136 = por %p134, %p135
      %p137 = scmp.ne.s32.totalorder %s129, %s132
      %p138 = scmp.eq.s32.totalorder %s16, 0
      %p139 = por %p137, %p138
      %p140 = scmp.ne.s32.totalorder %s129, %s132
      %p141 = scmp.eq.s32.totalorder %s21, 1
      %p142 = por %p140, %p141
      %p143 = scmp.ne.s32.totalorder %s132, %s133
      %p144 = scmp.eq.s32.totalorder %s21, 0
      %p145 = por %p143, %p144
      %p146 = scmp.ne.s32.totalorder %s132, %s133
      %p147 = scmp.eq.s32.totalorder %s22, 1
      %p148 = por %p146, %p147
      %p150 = scmp.ne.s32.totalorder %s133, %s149
      %p151 = scmp.eq.s32.totalorder %s22, 0
      %p152 = por %p150, %p151
      %p153 = scmp.le.s32.totalorder 1, %s16
      %p154 = scmp.lt.s32.totalorder %s16, 3
      %p155 = pnand %p153, %p154
      %p156 = pneg %p155
      // Predicated region
      $region9: #{tpu_custom_call.1} parent=5 // pred_check
        _
      $region10: #{tpu_custom_call.1} parent=5 // pred_check_branch
        %158 = sbr.rel (%p155) target = $region12
      $region11: #{tpu_custom_call.1} parent=5 // pred_region
        %s159 = ssub.s32 %s16, 1
        // Predicated region
        $region13: #{tpu_custom_call.1} parent=11 // pred_check
          %p160 = pneg %p63
        $region14: #{tpu_custom_call.1} parent=11 // pred_check_branch
          %162 = sbr.rel (%p160) target = $region16
        $region15: #{tpu_custom_call.1} parent=11 // pred_region
          %s163 = smul.u32 2, %s28
          %165 = vsyncadd [#allocation3], 0
          %s166 = smul.addr %s26, 2
          %s167 = sadd.s32 %s163, %s166
          %s168 = smul.addr %s167, 4
          %s169 = scalar_lea.hbm %s0, %s168
          %s171 = sshll.u32 %s169, 4
          %s172 = int_to_ptr.hbm [resolvable:$true] %s171
          %s173 = sshll.u32 [#allocation2], 4
          %s174 = int_to_ptr.vmem [resolvable:$true] %s173
          %176 = dma.hbm_to_vmem [thread:$0]  %s172, 128, %s174, [#allocation3]
        $region16: #{tpu_custom_call.1} parent=11 // pred_fallthru
          _
      $region12: #{tpu_custom_call.1} parent=5 // pred_fallthru
        _
      %p177 = scmp.lt.s32.totalorder %s16, 2
      // Predicated region
      $region17: #{tpu_custom_call.1} parent=5 // pred_check
        %p178 = pneg %p177
      $region18: #{tpu_custom_call.1} parent=5 // pred_check_branch
        %180 = sbr.rel (%p178) target = $region20
      $region19: #{tpu_custom_call.1} parent=5 // pred_region
        // Predicated region
        $region21: #{tpu_custom_call.1} parent=19 // pred_check
          %p181 = pneg %p85
        $region22: #{tpu_custom_call.1} parent=19 // pred_check_branch
          %183 = sbr.rel (%p181) target = $region24
        $region23: #{tpu_custom_call.1} parent=19 // pred_region
          %s184 = sand.u32 %s16, 1
          %s185 = scalar_lea.sflag [#allocation6], %s184
          %s186 = sand.u32 %s75, 1
          %s187 = smul.addr %s186, 384
          %s188 = scalar_lea.vmem [#allocation5], %s187
          %s189 = smul.u32 32, %s25
          %s190 = smul.u32 3, %s24
          %192 = vsyncadd %s185, 0
          %s193 = smul.addr %s189, 6
          %s194 = sadd.s32 %s190, %s193
          %s195 = smul.addr %s194, 4
          %s196 = scalar_lea.hbm %s1, %s195
          %s197 = sshll.u32 %s196, 4
          %s198 = int_to_ptr.hbm [resolvable:$true] %s197
          %s199 = sshll.u32 %s188, 4
          %s200 = int_to_ptr.vmem [resolvable:$true] %s199
          %205 = dma.hbm_to_vmem [thread:$0]  %s198, 6144, %s200, %s185, 384, 192, 12
        $region24: #{tpu_custom_call.1} parent=19 // pred_fallthru
          _
        // Predicated region
        $region25: #{tpu_custom_call.1} parent=19 // pred_check
          %p206 = pneg %p111
        $region26: #{tpu_custom_call.1} parent=19 // pred_check_branch
          %208 = sbr.rel (%p206) target = $region28
        $region27: #{tpu_custom_call.1} parent=19 // pred_region
          %s209 = sand.u32 %s16, 1
          %s210 = scalar_lea.sflag [#allocation6], %s209
          %s211 = sand.u32 %s101, 1
          %s212 = smul.addr %s211, 3
          %s213 = scalar_lea.vmem [#allocation7], %s212
          %s214 = smul.u32 3, %s24
          %216 = vsyncadd %s210, 0
          %s217 = scalar_lea.hbm %s2, %s214
          %s219 = sshll.u32 %s217, 4
          %s220 = int_to_ptr.hbm [resolvable:$true] %s219
          %s221 = sshll.u32 %s213, 4
          %s222 = int_to_ptr.vmem [resolvable:$true] %s221
          %224 = dma.hbm_to_vmem [thread:$0]  %s220, 48, %s222, %s210
        $region28: #{tpu_custom_call.1} parent=19 // pred_fallthru
          _
      $region20: #{tpu_custom_call.1} parent=5 // pred_fallthru
        _
      %p225 = scmp.le.s32.totalorder 1, %s16
      %p226 = scmp.lt.s32.totalorder %s16, 3
      %p227 = pnand %p225, %p226
      %p228 = pneg %p227
      // Predicated region
      $region29: #{tpu_custom_call.1} parent=5 // pred_check
        _
      $region30: #{tpu_custom_call.1} parent=5 // pred_check_branch
        %230 = sbr.rel (%p227) target = $region32
      $region31: #{tpu_custom_call.1} parent=5 // pred_region
        %s231 = ssub.s32 %s16, 1
        // Predicated region
        $region33: #{tpu_custom_call.1} parent=31 // pred_check
          %p232 = pneg %p63
        $region34: #{tpu_custom_call.1} parent=31 // pred_check_branch
          %234 = sbr.rel (%p232) target = $region36
        $region35: #{tpu_custom_call.1} parent=31 // pred_region
          %236 = dma.done [#allocation3], 128
        $region36: #{tpu_custom_call.1} parent=31 // pred_fallthru
          _
        %s237 = sand.u32 %s21, 1
        %s238 = scalar_lea.sflag [#allocation6], %s237
        %s239 = sand.u32 %s78, 1
        %s240 = smul.addr %s239, 384
        %s241 = scalar_lea.vmem [#allocation5], %s240
        // Predicated region
        $region37: #{tpu_custom_call.1} parent=31 // pred_check
          %p242 = pneg %p91
        $region38: #{tpu_custom_call.1} parent=31 // pred_check_branch
          %244 = sbr.rel (%p242) target = $region40
        $region39: #{tpu_custom_call.1} parent=31 // pred_region
          %246 = dma.done %s238, 6144
        $region40: #{tpu_custom_call.1} parent=31 // pred_fallthru
          _
        %s247 = sand.u32 %s21, 1
        %s248 = scalar_lea.sflag [#allocation6], %s247
        %s249 = sand.u32 %s104, 1
        %s250 = smul.addr %s249, 3
        %s251 = scalar_lea.vmem [#allocation7], %s250
        // Predicated region
        $region41: #{tpu_custom_call.1} parent=31 // pred_check
          %p252 = pneg %p117
        $region42: #{tpu_custom_call.1} parent=31 // pred_check_branch
          %254 = sbr.rel (%p252) target = $region44
        $region43: #{tpu_custom_call.1} parent=31 // pred_region
          %256 = dma.done %s248, 48
        $region44: #{tpu_custom_call.1} parent=31 // pred_fallthru
          _
        %p257 = pneg %p63
        %p258 = pneg %p60
        %s259 = sand.u32 %s21, 1
        %s260 = scalar_lea.sflag [#allocation6], %s259
        %s261 = sand.u32 %s78, 1
        %s262 = smul.addr %s261, 384
        %s263 = scalar_lea.vmem [#allocation5], %s262
        %p264 = pneg %p91
        %p265 = pneg %p88
        %s266 = sand.u32 %s21, 1
        %s267 = scalar_lea.sflag [#allocation6], %s266
        %s268 = sand.u32 %s104, 1
        %s269 = smul.addr %s268, 3
        %s270 = scalar_lea.vmem [#allocation7], %s269
        %p271 = pneg %p117
        %p272 = pneg %p114
        %p273 = pneg %p145
        %p274 = pneg %p142
        %s275 = sand.u32 %s132, 1
        %s276 = scalar_lea.sflag [#allocation4], %s275
        %s277 = sand.u32 %s132, 1
        %s278 = smul.addr %s277, 24
        %s279 = scalar_lea.vmem [#allocation8], %s278
        %s280 = smul.u32 2, %s28
        %s281 = smul.u32 32, %s28
        %s282 = smul.u32 3, %s27
        %s283 = smul.u32 3, %s27
        %s284 = smul.u32 3, %s27
        %v285 = vld [vmem:[#allocation2] sm:$0xff]
        %v286 = vld [vmem:[%s241] sm:$0xff]
        %v287 = vld [vmem:[%s241 + $0x8] sm:$0xf]
        %v288 = vld [vmem:[%s241 + $0xc] sm:$0xff]
        %v289 = vld [vmem:[%s241 + $0x14] sm:$0xf]
        %v290 = vld [vmem:[%s241 + $0x18] sm:$0xff]
        %v291 = vld [vmem:[%s241 + $0x20] sm:$0xf]
        %v292 = vld [vmem:[%s241 + $0x24] sm:$0xff]
        %v293 = vld [vmem:[%s241 + $0x2c] sm:$0xf]
        %v294 = vld [vmem:[%s241 + $0x30] sm:$0xff]
        %v295 = vld [vmem:[%s241 + $0x38] sm:$0xf]
        %v296 = vld [vmem:[%s241 + $0x3c] sm:$0xff]
        %v297 = vld [vmem:[%s241 + $0x44] sm:$0xf]
        %v298 = vld [vmem:[%s241 + $0x48] sm:$0xff]
        %v299 = vld [vmem:[%s241 + $0x50] sm:$0xf]
        %v300 = vld [vmem:[%s241 + $0x54] sm:$0xff]
        %v301 = vld [vmem:[%s241 + $0x5c] sm:$0xf]
        %v302 = vld [vmem:[%s241 + $0x60] sm:$0xff]
        %v303 = vld [vmem:[%s241 + $0x68] sm:$0xf]
        %v304 = vld [vmem:[%s241 + $0x6c] sm:$0xff]
        %v305 = vld [vmem:[%s241 + $0x74] sm:$0xf]
        %v306 = vld [vmem:[%s241 + $0x78] sm:$0xff]
        %v307 = vld [vmem:[%s241 + $0x80] sm:$0xf]
        %v308 = vld [vmem:[%s241 + $0x84] sm:$0xff]
        %v309 = vld [vmem:[%s241 + $0x8c] sm:$0xf]
        %v310 = vld [vmem:[%s241 + $0x90] sm:$0xff]
        %v311 = vld [vmem:[%s241 + $0x98] sm:$0xf]
        %v312 = vld [vmem:[%s241 + $0x9c] sm:$0xff]
        %v313 = vld [vmem:[%s241 + $0xa4] sm:$0xf]
        %v314 = vld [vmem:[%s241 + $0xa8] sm:$0xff]
        %v315 = vld [vmem:[%s241 + $0xb0] sm:$0xf]
        %v316 = vld [vmem:[%s241 + $0xb4] sm:$0xff]
        %v317 = vld [vmem:[%s241 + $0xbc] sm:$0xf]
        %v318 = vld [vmem:[%s241 + $0xc0] sm:$0xff]
        %v319 = vld [vmem:[%s241 + $0xc8] sm:$0xf]
        %v320 = vld [vmem:[%s241 + $0xcc] sm:$0xff]
        %v321 = vld [vmem:[%s241 + $0xd4] sm:$0xf]
        %v322 = vld [vmem:[%s241 + $0xd8] sm:$0xff]
        %v323 = vld [vmem:[%s241 + $0xe0] sm:$0xf]
        %v324 = vld [vmem:[%s241 + $0xe4] sm:$0xff]
        %v325 = vld [vmem:[%s241 + $0xec] sm:$0xf]
        %v326 = vld [vmem:[%s241 + $0xf0] sm:$0xff]
        %v327 = vld [vmem:[%s241 + $0xf8] sm:$0xf]
        %v328 = vld [vmem:[%s241 + $0xfc] sm:$0xff]
        %v329 = vld [vmem:[%s241 + $0x104] sm:$0xf]
        %v330 = vld [vmem:[%s241 + $0x108] sm:$0xff]
        %v331 = vld [vmem:[%s241 + $0x110] sm:$0xf]
        %v332 = vld [vmem:[%s241 + $0x114] sm:$0xff]
        %v333 = vld [vmem:[%s241 + $0x11c] sm:$0xf]
        %v334 = vld [vmem:[%s241 + $0x120] sm:$0xff]
        %v335 = vld [vmem:[%s241 + $0x128] sm:$0xf]
        %v336 = vld [vmem:[%s241 + $0x12c] sm:$0xff]
        %v337 = vld [vmem:[%s241 + $0x134] sm:$0xf]
        %v338 = vld [vmem:[%s241 + $0x138] sm:$0xff]
        %v339 = vld [vmem:[%s241 + $0x140] sm:$0xf]
        %v340 = vld [vmem:[%s241 + $0x144] sm:$0xff]
        %v341 = vld [vmem:[%s241 + $0x14c] sm:$0xf]
        %v342 = vld [vmem:[%s241 + $0x150] sm:$0xff]
        %v343 = vld [vmem:[%s241 + $0x158] sm:$0xf]
        %v344 = vld [vmem:[%s241 + $0x15c] sm:$0xff]
        %v345 = vld [vmem:[%s241 + $0x164] sm:$0xf]
        %v346 = vld [vmem:[%s241 + $0x168] sm:$0xff]
        %v347 = vld [vmem:[%s241 + $0x170] sm:$0xf]
        %v348 = vld [vmem:[%s241 + $0x174] sm:$0xff]
        %v349 = vld [vmem:[%s241 + $0x17c] sm:$0xf]
        %v351 = vunpack.c.l.b16 %v285
        %v352 = vunpack.c.h.b16 %v285
        %v353 = vpack.c.b16 %v351, %v351
        %v354 = vpack.c.b16 %v352, %v352
        %v421 = vunpack.c.l.b16 %v286
        %v422 = vunpack.c.h.b16 %v286
        %v423 = vunpack.c.l.b16 %v287
        %v424 = vunpack.c.l.b16 %v288
        %v425 = vunpack.c.h.b16 %v288
        %v426 = vunpack.c.l.b16 %v289
        %v427 = vunpack.c.l.b16 %v290
        %v428 = vunpack.c.h.b16 %v290
        %v429 = vunpack.c.l.b16 %v291
        %v430 = vunpack.c.l.b16 %v292
        %v431 = vunpack.c.h.b16 %v292
        %v432 = vunpack.c.l.b16 %v293
        %v433 = vunpack.c.l.b16 %v294
        %v434 = vunpack.c.h.b16 %v294
        %v435 = vunpack.c.l.b16 %v295
        %v436 = vunpack.c.l.b16 %v296
        %v437 = vunpack.c.h.b16 %v296
        %v438 = vunpack.c.l.b16 %v297
        %v439 = vunpack.c.l.b16 %v298
        %v440 = vunpack.c.h.b16 %v298
        %v441 = vunpack.c.l.b16 %v299
        %v442 = vunpack.c.l.b16 %v300
        %v443 = vunpack.c.h.b16 %v300
        %v444 = vunpack.c.l.b16 %v301
        %v445 = vunpack.c.l.b16 %v302
        %v446 = vunpack.c.h.b16 %v302
        %v447 = vunpack.c.l.b16 %v303
        %v448 = vunpack.c.l.b16 %v304
        %v449 = vunpack.c.h.b16 %v304
        %v450 = vunpack.c.l.b16 %v305
        %v451 = vunpack.c.l.b16 %v306
        %v452 = vunpack.c.h.b16 %v306
        %v453 = vunpack.c.l.b16 %v307
        %v454 = vunpack.c.l.b16 %v308
        %v455 = vunpack.c.h.b16 %v308
        %v456 = vunpack.c.l.b16 %v309
        %v457 = vunpack.c.l.b16 %v310
        %v458 = vunpack.c.h.b16 %v310
        %v459 = vunpack.c.l.b16 %v311
        %v460 = vunpack.c.l.b16 %v312
        %v461 = vunpack.c.h.b16 %v312
        %v462 = vunpack.c.l.b16 %v313
        %v463 = vunpack.c.l.b16 %v314
        %v464 = vunpack.c.h.b16 %v314
        %v465 = vunpack.c.l.b16 %v315
        %v466 = vunpack.c.l.b16 %v316
        %v467 = vunpack.c.h.b16 %v316
        %v468 = vunpack.c.l.b16 %v317
        %v469 = vunpack.c.l.b16 %v318
        %v470 = vunpack.c.h.b16 %v318
        %v471 = vunpack.c.l.b16 %v319
        %v472 = vunpack.c.l.b16 %v320
        %v473 = vunpack.c.h.b16 %v320
        %v474 = vunpack.c.l.b16 %v321
        %v475 = vunpack.c.l.b16 %v322
        %v476 = vunpack.c.h.b16 %v322
        %v477 = vunpack.c.l.b16 %v323
        %v478 = vunpack.c.l.b16 %v324
        %v479 = vunpack.c.h.b16 %v324
        %v480 = vunpack.c.l.b16 %v325
        %v481 = vunpack.c.l.b16 %v326
        %v482 = vunpack.c.h.b16 %v326
        %v483 = vunpack.c.l.b16 %v327
        %v484 = vunpack.c.l.b16 %v328
        %v485 = vunpack.c.h.b16 %v328
        %v486 = vunpack.c.l.b16 %v329
        %v487 = vunpack.c.l.b16 %v330
        %v488 = vunpack.c.h.b16 %v330
        %v489 = vunpack.c.l.b16 %v331
        %v490 = vunpack.c.l.b16 %v332
        %v491 = vunpack.c.h.b16 %v332
        %v492 = vunpack.c.l.b16 %v333
        %v493 = vunpack.c.l.b16 %v334
        %v494 = vunpack.c.h.b16 %v334
        %v495 = vunpack.c.l.b16 %v335
        %v496 = vunpack.c.l.b16 %v336
        %v497 = vunpack.c.h.b16 %v336
        %v498 = vunpack.c.l.b16 %v337
        %v499 = vunpack.c.l.b16 %v338
        %v500 = vunpack.c.h.b16 %v338
        %v501 = vunpack.c.l.b16 %v339
        %v502 = vunpack.c.l.b16 %v340
        %v503 = vunpack.c.h.b16 %v340
        %v504 = vunpack.c.l.b16 %v341
        %v505 = vunpack.c.l.b16 %v342
        %v506 = vunpack.c.h.b16 %v342
        %v507 = vunpack.c.l.b16 %v343
        %v508 = vunpack.c.l.b16 %v344
        %v509 = vunpack.c.h.b16 %v344
        %v510 = vunpack.c.l.b16 %v345
        %v511 = vunpack.c.l.b16 %v346
        %v512 = vunpack.c.h.b16 %v346
        %v513 = vunpack.c.l.b16 %v347
        %v514 = vunpack.c.l.b16 %v348
        %v515 = vunpack.c.h.b16 %v348
        %v516 = vunpack.c.l.b16 %v349
        %v517 = vpack.c.b16 %v424, %v421
        %v518 = vpack.c.b16 %v425, %v422
        %v519 = vpack.c.b16 %v426, %v423
        %v520 = vpack.c.b16 %v430, %v427
        %v521 = vpack.c.b16 %v431, %v428
        %v522 = vpack.c.b16 %v432, %v429
        %v523 = vpack.c.b16 %v436, %v433
        %v524 = vpack.c.b16 %v437, %v434
        %v525 = vpack.c.b16 %v438, %v435
        %v526 = vpack.c.b16 %v442, %v439
        %v527 = vpack.c.b16 %v443, %v440
        %v528 = vpack.c.b16 %v444, %v441
        %v529 = vpack.c.b16 %v448, %v445
        %v530 = vpack.c.b16 %v449, %v446
        %v531 = vpack.c.b16 %v450, %v447
        %v532 = vpack.c.b16 %v454, %v451
        %v533 = vpack.c.b16 %v455, %v452
        %v534 = vpack.c.b16 %v456, %v453
        %v535 = vpack.c.b16 %v460, %v457
        %v536 = vpack.c.b16 %v461, %v458
        %v537 = vpack.c.b16 %v462, %v459
        %v538 = vpack.c.b16 %v466, %v463
        %v539 = vpack.c.b16 %v467, %v464
        %v540 = vpack.c.b16 %v468, %v465
        %v541 = vpack.c.b16 %v472, %v469
        %v542 = vpack.c.b16 %v473, %v470
        %v543 = vpack.c.b16 %v474, %v471
        %v544 = vpack.c.b16 %v478, %v475
        %v545 = vpack.c.b16 %v479, %v476
        %v546 = vpack.c.b16 %v480, %v477
        %v547 = vpack.c.b16 %v484, %v481
        %v548 = vpack.c.b16 %v485, %v482
        %v549 = vpack.c.b16 %v486, %v483
        %v550 = vpack.c.b16 %v490, %v487
        %v551 = vpack.c.b16 %v491, %v488
        %v552 = vpack.c.b16 %v492, %v489
        %v553 = vpack.c.b16 %v496, %v493
        %v554 = vpack.c.b16 %v497, %v494
        %v555 = vpack.c.b16 %v498, %v495
        %v556 = vpack.c.b16 %v502, %v499
        %v557 = vpack.c.b16 %v503, %v500
        %v558 = vpack.c.b16 %v504, %v501
        %v559 = vpack.c.b16 %v508, %v505
        %v560 = vpack.c.b16 %v509, %v506
        %v561 = vpack.c.b16 %v510, %v507
        %v562 = vpack.c.b16 %v514, %v511
        %v563 = vpack.c.b16 %v515, %v512
        %v564 = vpack.c.b16 %v516, %v513
        %613 = vmatpush.bf16.msra.mxu0 %v538
        %614 = vmatpush.bf16.msra.mxu0 %v535
        %615 = vmatpush.bf16.msra.mxu0 %v532
        %616 = vmatpush.bf16.msra.mxu0 %v529
        %617 = vmatpush.bf16.msra.mxu0 %v526
        %618 = vmatpush.bf16.msra.mxu0 %v523
        %619 = vmatpush.bf16.msra.mxu0 %v520
        %620 = vmatpush.bf16.msra.mxu0 %v517
        %621 = vmatmul.bf16.gmra.mxu0 %v353
        %v622 = vpop.f32.mrf.mxu0
        %v623 = vadd.f32 0.0, %v622
        %v624 = vpop.f32.mrf.mxu0
        %625 = vdwg.mxu0
        %626 = vmatpush.bf16.msra.mxu0 %v562
        %627 = vmatpush.bf16.msra.mxu0 %v559
        %628 = vmatpush.bf16.msra.mxu0 %v556
        %629 = vmatpush.bf16.msra.mxu0 %v553
        %630 = vmatpush.bf16.msra.mxu0 %v550
        %631 = vmatpush.bf16.msra.mxu0 %v547
        %632 = vmatpush.bf16.msra.mxu0 %v544
        %633 = vmatpush.bf16.msra.mxu0 %v541
        %634 = vmatmul.bf16.gmra.mxu0 %v354
        %v635 = vpop.f32.mrf.mxu0
        %v636 = vadd.f32 %v623, %v635
        %v637 = vpop.f32.mrf.mxu0
        %638 = vdwg.mxu0
        %639 = vmatpush.bf16.msra.mxu0 %v539
        %640 = vmatpush.bf16.msra.mxu0 %v536
        %641 = vmatpush.bf16.msra.mxu0 %v533
        %642 = vmatpush.bf16.msra.mxu0 %v530
        %643 = vmatpush.bf16.msra.mxu0 %v527
        %644 = vmatpush.bf16.msra.mxu0 %v524
        %645 = vmatpush.bf16.msra.mxu0 %v521
        %646 = vmatpush.bf16.msra.mxu0 %v518
        %647 = vmatmul.bf16.gmra.mxu0 %v353
        %v648 = vpop.f32.mrf.mxu0
        %v649 = vadd.f32 0.0, %v648
        %v650 = vpop.f32.mrf.mxu0
        %651 = vdwg.mxu0
        %652 = vmatpush.bf16.msra.mxu0 %v563
        %653 = vmatpush.bf16.msra.mxu0 %v560
        %654 = vmatpush.bf16.msra.mxu0 %v557
        %655 = vmatpush.bf16.msra.mxu0 %v554
        %656 = vmatpush.bf16.msra.mxu0 %v551
        %657 = vmatpush.bf16.msra.mxu0 %v548
        %658 = vmatpush.bf16.msra.mxu0 %v545
        %659 = vmatpush.bf16.msra.mxu0 %v542
        %660 = vmatmul.bf16.gmra.mxu0 %v354
        %v661 = vpop.f32.mrf.mxu0
        %v662 = vadd.f32 %v649, %v661
        %v663 = vpop.f32.mrf.mxu0
        %664 = vdwg.mxu0
        %665 = vmatpush.bf16.msra.mxu0 %v540
        %666 = vmatpush.bf16.msra.mxu0 %v537
        %667 = vmatpush.bf16.msra.mxu0 %v534
        %668 = vmatpush.bf16.msra.mxu0 %v531
        %669 = vmatpush.bf16.msra.mxu0 %v528
        %670 = vmatpush.bf16.msra.mxu0 %v525
        %671 = vmatpush.bf16.msra.mxu0 %v522
        %672 = vmatpush.bf16.msra.mxu0 %v519
        %673 = vmatmul.bf16.gmra.mxu0 %v353
        %v674 = vpop.f32.mrf.mxu0
        %v675 = vadd.f32 0.0, %v674
        %v676 = vpop.f32.mrf.mxu0
        %677 = vdwg.mxu0
        %678 = vmatpush.bf16.msra.mxu0 %v564
        %679 = vmatpush.bf16.msra.mxu0 %v561
        %680 = vmatpush.bf16.msra.mxu0 %v558
        %681 = vmatpush.bf16.msra.mxu0 %v555
        %682 = vmatpush.bf16.msra.mxu0 %v552
        %683 = vmatpush.bf16.msra.mxu0 %v549
        %684 = vmatpush.bf16.msra.mxu0 %v546
        %685 = vmatpush.bf16.msra.mxu0 %v543
        %686 = vmatmul.bf16.gmra.mxu0 %v354
        %v687 = vpop.f32.mrf.mxu0
        %v688 = vadd.f32 %v675, %v687
        %v689 = vpop.f32.mrf.mxu0
        %690 = vdwg.mxu0
        %p691 = scmp.eq.s32.totalorder %s28, 0
        // Predicated region
        $region45: #{tpu_custom_call.1} parent=31 // pred_check
          %p692 = pneg %p691
        $region46: #{tpu_custom_call.1} parent=31 // pred_check_branch
          %694 = sbr.rel (%p692) target = $region48
        $region47: #{tpu_custom_call.1} parent=31 // pred_region
          %695 = vst [vmem:[%s279] sm:$0xff] %v636
          %696 = vst [vmem:[%s279 + $0x8] sm:$0xff] %v662
          %697 = vst [vmem:[%s279 + $0x10] sm:$0xff] %v688
        $region48: #{tpu_custom_call.1} parent=31 // pred_fallthru
          _
        %p698 = scmp.gt.s32.totalorder %s28, 0
        // Predicated region
        $region49: #{tpu_custom_call.1} parent=31 // pred_check
          %p699 = pneg %p698
        $region50: #{tpu_custom_call.1} parent=31 // pred_check_branch
          %701 = sbr.rel (%p699) target = $region52
        $region51: #{tpu_custom_call.1} parent=31 // pred_region
          %v702 = vld [vmem:[%s279] sm:$0xff]
          %v703 = vld [vmem:[%s279 + $0x8] sm:$0xff]
          %v704 = vld [vmem:[%s279 + $0x10] sm:$0xff]
          %v705 = vadd.f32 %v702, %v636
          %v706 = vadd.f32 %v703, %v662
          %v707 = vadd.f32 %v704, %v688
          %708 = vst [vmem:[%s279] sm:$0xff] %v705
          %709 = vst [vmem:[%s279 + $0x8] sm:$0xff] %v706
          %710 = vst [vmem:[%s279 + $0x10] sm:$0xff] %v707
        $region52: #{tpu_custom_call.1} parent=31 // pred_fallthru
          _
        // Predicated region
        $region53: #{tpu_custom_call.1} parent=31 // pred_check
          %p711 = pneg %p691
        $region54: #{tpu_custom_call.1} parent=31 // pred_check_branch
          %713 = sbr.rel (%p711) target = $region56
        $region55: #{tpu_custom_call.1} parent=31 // pred_region
          %v714 = vld [vmem:[%s279] sm:$0xff]
          %v715 = vld [vmem:[%s279 + $0x8] sm:$0xff]
          %v716 = vld [vmem:[%s279 + $0x10] sm:$0xff]
          %v717 = vld [vmem:[%s251] sm:$0x7]
          %v719 = vperm.slane %v717, 0
          %v720 = vperm.slane %v717, 1
          %v721 = vperm.slane %v717, 2
          %v725 = vadd.f32 %v714, %v719
          %v726 = vadd.f32 %v715, %v720
          %v727 = vadd.f32 %v716, %v721
          %728 = vst [vmem:[%s279] sm:$0xff] %v725
          %729 = vst [vmem:[%s279 + $0x8] sm:$0xff] %v726
          %730 = vst [vmem:[%s279 + $0x10] sm:$0xff] %v727
        $region56: #{tpu_custom_call.1} parent=31 // pred_fallthru
          _
        %s731 = sand.u32 %s132, 1
        %s732 = scalar_lea.sflag [#allocation4], %s731
        %s733 = sand.u32 %s132, 1
        %s734 = smul.addr %s733, 24
        %s735 = scalar_lea.vmem [#allocation8], %s734
        // Predicated region
        $region57: #{tpu_custom_call.1} parent=31 // pred_check
          %p736 = pneg %p142
        $region58: #{tpu_custom_call.1} parent=31 // pred_check_branch
          %738 = sbr.rel (%p736) target = $region60
        $region59: #{tpu_custom_call.1} parent=31 // pred_region
          %s739 = smul.u32 3, %s27
          %741 = vsyncadd %s732, 0
          %s742 = smul.addr %s26, 6
          %s743 = sadd.s32 %s739, %s742
          %s744 = smul.addr %s743, 8
          %s745 = scalar_lea.hbm %s3, %s744
          %s747 = sshll.u32 %s735, 4
          %s748 = int_to_ptr.vmem [resolvable:$true] %s747
          %s749 = sshll.u32 %s745, 4
          %s750 = int_to_ptr.hbm [resolvable:$true] %s749
          %752 = dma.vmem_to_hbm [thread:$0]  %s748, 384, %s750, %s732
        $region60: #{tpu_custom_call.1} parent=31 // pred_fallthru
          _
      $region32: #{tpu_custom_call.1} parent=5 // pred_fallthru
        _
      %p753 = scmp.le.s32.totalorder 2, %s16
      // Predicated region
      $region61: #{tpu_custom_call.1} parent=5 // pred_check
        %p754 = pneg %p753
      $region62: #{tpu_custom_call.1} parent=5 // pred_check_branch
        %756 = sbr.rel (%p754) target = $region64
      $region63: #{tpu_custom_call.1} parent=5 // pred_region
        %s757 = ssub.s32 %s16, 2
        // Predicated region
        $region65: #{tpu_custom_call.1} parent=63 // pred_check
          %p758 = pneg %p148
        $region66: #{tpu_custom_call.1} parent=63 // pred_check_branch
          %760 = sbr.rel (%p758) target = $region68
        $region67: #{tpu_custom_call.1} parent=63 // pred_region
          %s761 = sand.u32 %s133, 1
          %s762 = scalar_lea.sflag [#allocation4], %s761
          %s763 = sand.u32 %s133, 1
          %s764 = smul.addr %s763, 24
          %s765 = scalar_lea.vmem [#allocation8], %s764
          %767 = dma.done %s762, 384
        $region68: #{tpu_custom_call.1} parent=63 // pred_fallthru
          _
      $region64: #{tpu_custom_call.1} parent=5 // pred_fallthru
        _
    $region6: #{tpu_custom_call.1} parent=1 // loop_footer
      %s20 = sadd.s32 1, %s16
    $region7: #{tpu_custom_call.1} parent=1 // loop_footer_branch
      %15 = sbr.rel target = $region3
    $region8: #{tpu_custom_call.1} parent=1 // loop_exit
      _
    %768 = vsyncpa [#allocation3], 1
    %s769 = scalar_lea.sflag [#allocation3], 1
    %770 = vsyncpa %s769, 1
    %771 = vsyncpa [#allocation6], 1
    %s772 = scalar_lea.sflag [#allocation6], 1
    %773 = vsyncpa %s772, 1
    %774 = vsyncpa [#allocation4], 1
    %s775 = scalar_lea.sflag [#allocation4], 1
    %776 = vsyncpa %s775, 1

</llo_original>
